<compile_context>
chip_gen: v7x
topology: tpu7x:2x2x1
jax: 0.10.0
libtpu: 0.0.40
codegen_flags: <defaults>
</compile_context>

<pallas_src>
import functools

import numpy as np
import jax
import jax.numpy as jnp
from jax.experimental import pallas as pl
from jax.experimental.pallas import tpu as pltpu


def get_sobel_kernel(k=3):
    rng = np.linspace(-(k // 2), k // 2, k)
    x, y = np.meshgrid(rng, rng)
    num = x
    den = x ** 2 + y ** 2
    den[:, k // 2] = 1
    return num / den


def _si_kernel(x_ref, out_ref, pad_ref, *, wx, wy, H, W, k):
    """One grid step = NB batch images.

    x_ref:   (NB, C, H, W)        VMEM tile
    out_ref: (NB, C, 1)           VMEM tile (per-step output block)
    pad_ref: (NB, C, H+2p, W+2p)  VMEM scratch (zero-padded spatial slab)
    wx, wy:  k x k numpy Sobel taps (trace-time constants)
    """
    nb, C = x_ref.shape[0], x_ref.shape[1]
    p = k // 2
    Hp, Wp = H + 2 * p, W + 2 * p
    f32 = jnp.float32

    # Zero only the thin halo ring; the interior is fully overwritten every
    # step, so we never rewrite the whole padded slab with zeros.
    if p > 0:
        zrow = jnp.zeros((nb, C, p, Wp), f32)
        pad_ref[:, :, 0:p, :] = zrow
        pad_ref[:, :, p + H:Hp, :] = zrow
        zcol = jnp.zeros((nb, C, Hp, p), f32)
        pad_ref[:, :, :, 0:p] = zcol
        pad_ref[:, :, :, p + W:Wp] = zcol
    pad_ref[:, :, p:p + H, p:p + W] = x_ref[...].astype(f32)

    # Depthwise cross-correlation (all channels share the same Sobel taps),
    # accumulated tap-by-tap from static slices of the padded slab.
    gx = None
    gy = None

    def _acc(a, v):
        return v if a is None else a + v

    for di in range(k):
        for dj in range(k):
            wxt = float(wx[di, dj])
            wyt = float(wy[di, dj])
            if wxt == 0.0 and wyt == 0.0:
                continue
            tap = pad_ref[:, :, di:di + H, dj:dj + W]
            if wxt != 0.0 and wyt != 0.0 and abs(wxt) == abs(wyt):
                # Corner taps of the 3x3 Sobel: scale once, share for gx & gy.
                s = abs(wxt) * tap
                gx = _acc(gx, s if wxt > 0.0 else -s)
                gy = _acc(gy, s if wyt > 0.0 else -s)
            else:
                if wxt != 0.0:
                    gx = _acc(gx, wxt * tap)
                if wyt != 0.0:
                    gy = _acc(gy, wyt * tap)

    if gx is None:
        gx = jnp.zeros((nb, C, H, W), f32)
    if gy is None:
        gy = jnp.zeros((nb, C, H, W), f32)

    sq = gx * gx + gy * gy          # |grad|^2, reused for E[v^2]
    value = jnp.sqrt(sq)            # |grad|

    inv_hw = 1.0 / float(H * W)
    # Reduce lanes (W) first, then H, keeping a trailing unit dim to match the
    # (NB, C, 1) output block.
    sum_v = jnp.sum(jnp.sum(value, axis=3), axis=2, keepdims=True)   # (NB, C, 1)
    sum_sq = jnp.sum(jnp.sum(sq, axis=3), axis=2, keepdims=True)     # (NB, C, 1)
    mean_v = sum_v * inv_hw
    var = sum_sq * inv_hw - mean_v * mean_v
    out_ref[...] = jnp.sqrt(jnp.maximum(var, 0.0))   # clamp: f32 cancellation


def si_forward(x, k_sobel=3, block_bytes_target=2 * 1024 * 1024):
    """Pallas equivalent of SI(inp=C, k_sobel).forward(x) for x: (N, C, H, W) f32."""
    N, C, H, W = x.shape
    p = k_sobel // 2
    sobel = get_sobel_kernel(k_sobel).astype(np.float32)        # vars[0] (per channel)
    sobel_t = np.ascontiguousarray(sobel.T).astype(np.float32)  # vars[1]

    # Batch images per grid step: amortize the fixed per-step overhead while
    # keeping the double-buffered input tile + padded scratch + gx/gy/|grad|
    # temporaries within a modest VMEM budget on every chip generation.
    # (For very large C*H*W slabs this degrades to nb=1; tiling over H with a
    #  halo would be the next step there, not needed at these sizes.)
    bytes_per_image = C * H * W * 4
    nb = int(max(1, min(N, block_bytes_target // max(bytes_per_image, 1))))
    grid_n = pl.cdiv(N, nb)

    kernel = functools.partial(_si_kernel, wx=sobel, wy=sobel_t, H=H, W=W, k=k_sobel)

    out3 = pl.pallas_call(
        kernel,
        out_shape=jax.ShapeDtypeStruct((N, C, 1), jnp.float32),
        grid_spec=pltpu.PrefetchScalarGridSpec(
            num_scalar_prefetch=0,
            grid=(grid_n,),
            in_specs=[pl.BlockSpec((nb, C, H, W), lambda n: (n, 0, 0, 0))],
            out_specs=pl.BlockSpec((nb, C, 1), lambda n: (n, 0, 0)),
            scratch_shapes=[pltpu.VMEM((nb, C, H + 2 * p, W + 2 * p), jnp.float32)],
        ),
        compiler_params=pltpu.CompilerParams(
            dimension_semantics=("parallel",),     # batch axis shards across TCs (v7x)
            vmem_limit_bytes=32 * 1024 * 1024,     # above v5e's 16 MiB scoped default
        ),
    )(x)
    return out3[..., 0]


def _reference_si(x_np, k=3):
    """Pure-numpy reference mirroring the PyTorch module."""
    sobel = get_sobel_kernel(k)
    sobel_t = sobel.T
    N, C, H, W = x_np.shape
    p = k // 2
    xp = np.pad(x_np, ((0, 0), (0, 0), (p, p), (p, p)))
    gx = np.zeros_like(x_np, dtype=np.float64)
    gy = np.zeros_like(x_np, dtype=np.float64)
    for di in range(k):
        for dj in range(k):
            tap = xp[:, :, di:di + H, dj:dj + W]
            gx += sobel[di, dj] * tap
            gy += sobel_t[di, dj] * tap
    value = np.sqrt(gx ** 2 + gy ** 2)
    denom = H * W
    v = value.reshape(N, C, -1)
    var = (v ** 2).sum(-1) / denom - (v.sum(-1) / denom) ** 2
    return np.sqrt(var)


if __name__ == "__main__":
    key = jax.random.PRNGKey(0)
    N, C, H, W = 2, 4, 16, 16   # inp = C = 4, k_sobel = 3
    x = jax.random.normal(key, (N, C, H, W), dtype=jnp.float32)

    out = si_forward(x, k_sobel=3)
    out = jax.block_until_ready(out)

    ref = _reference_si(np.asarray(x), k=3)
    np.testing.assert_allclose(np.asarray(out), ref, rtol=1e-4, atol=1e-5)

    print("KERNEL_OK")
</pallas_src>

<mosaic_0001>
module attributes {stable_mosaic.version = 11 : i64} {
  func.func @_si_kernel(%arg0: i32, %arg1: memref<2x4x16x16xf32, #tpu.memory_space<vmem>>, %arg2: memref<2x4x1xf32, #tpu.memory_space<vmem>>, %arg3: memref<2x4x18x18xf32, #tpu.memory_space<vmem>>) attributes {dimension_semantics = [#tpu.dimension_semantics<parallel>], iteration_bounds = array<i64: 1>, scalar_prefetch = 0 : i64, scratch_operands = 1 : i64, tpu.core_type = #tpu.core_type<tc>, window_params = [{transform_indices = @transform_0, window_bounds = array<i64: 2, 4, 16, 16>}, {transform_indices = @transform_1, window_bounds = array<i64: 2, 4, 1>}]} {
    %cst = arith.constant 0.000000e+00 : f32
    %0 = vector.broadcast %cst : f32 to vector<2x4x1x18xf32>
    %c0 = arith.constant 0 : index
    %c0_0 = arith.constant 0 : index
    %c0_1 = arith.constant 0 : index
    %c0_2 = arith.constant 0 : index
    %1 = vector.load %arg3[%c0, %c0_0, %c0_1, %c0_2] : memref<2x4x18x18xf32, #tpu.memory_space<vmem>>, vector<2x4x1x18xf32>
    tpu.vector_store %arg3[%c0, %c0_0, %c0_1, %c0_2], %0 {strides = array<i32>} : memref<2x4x18x18xf32, #tpu.memory_space<vmem>>, vector<2x4x1x18xf32>,
    %c0_3 = arith.constant 0 : index
    %c0_4 = arith.constant 0 : index
    %c17 = arith.constant 17 : index
    %c0_5 = arith.constant 0 : index
    %2 = vector.load %arg3[%c0_3, %c0_4, %c17, %c0_5] : memref<2x4x18x18xf32, #tpu.memory_space<vmem>>, vector<2x4x1x18xf32>
    tpu.vector_store %arg3[%c0_3, %c0_4, %c17, %c0_5], %0 {strides = array<i32>} : memref<2x4x18x18xf32, #tpu.memory_space<vmem>>, vector<2x4x1x18xf32>,
    %cst_6 = arith.constant 0.000000e+00 : f32
    %3 = vector.broadcast %cst_6 : f32 to vector<2x4x18x1xf32>
    %c0_7 = arith.constant 0 : index
    %c0_8 = arith.constant 0 : index
    %c0_9 = arith.constant 0 : index
    %c0_10 = arith.constant 0 : index
    %4 = vector.load %arg3[%c0_7, %c0_8, %c0_9, %c0_10] : memref<2x4x18x18xf32, #tpu.memory_space<vmem>>, vector<2x4x18x1xf32>
    tpu.vector_store %arg3[%c0_7, %c0_8, %c0_9, %c0_10], %3 {strides = array<i32>} : memref<2x4x18x18xf32, #tpu.memory_space<vmem>>, vector<2x4x18x1xf32>,
    %c0_11 = arith.constant 0 : index
    %c0_12 = arith.constant 0 : index
    %c0_13 = arith.constant 0 : index
    %c17_14 = arith.constant 17 : index
    %5 = vector.load %arg3[%c0_11, %c0_12, %c0_13, %c17_14] : memref<2x4x18x18xf32, #tpu.memory_space<vmem>>, vector<2x4x18x1xf32>
    tpu.vector_store %arg3[%c0_11, %c0_12, %c0_13, %c17_14], %3 {strides = array<i32>} : memref<2x4x18x18xf32, #tpu.memory_space<vmem>>, vector<2x4x18x1xf32>,
    %c0_15 = arith.constant 0 : index
    %c0_16 = arith.constant 0 : index
    %c0_17 = arith.constant 0 : index
    %c0_18 = arith.constant 0 : index
    %6 = vector.load %arg1[%c0_15, %c0_16, %c0_17, %c0_18] : memref<2x4x16x16xf32, #tpu.memory_space<vmem>>, vector<2x4x16x16xf32>
    %c0_19 = arith.constant 0 : index
    %c0_20 = arith.constant 0 : index
    %c1 = arith.constant 1 : index
    %c1_21 = arith.constant 1 : index
    %7 = vector.load %arg3[%c0_19, %c0_20, %c1, %c1_21] : memref<2x4x18x18xf32, #tpu.memory_space<vmem>>, vector<2x4x16x16xf32>
    tpu.vector_store %arg3[%c0_19, %c0_20, %c1, %c1_21], %6 {strides = array<i32>} : memref<2x4x18x18xf32, #tpu.memory_space<vmem>>, vector<2x4x16x16xf32>,
    %c0_22 = arith.constant 0 : index
    %c0_23 = arith.constant 0 : index
    %c0_24 = arith.constant 0 : index
    %c0_25 = arith.constant 0 : index
    %8 = vector.load %arg3[%c0_22, %c0_23, %c0_24, %c0_25] : memref<2x4x18x18xf32, #tpu.memory_space<vmem>>, vector<2x4x16x16xf32>
    %cst_26 = arith.constant 5.000000e-01 : f32
    %9 = vector.broadcast %cst_26 : f32 to vector<2x4x16x16xf32>
    %10 = arith.mulf %9, %8 : vector<2x4x16x16xf32>
    %cst_27 = arith.constant 0.000000e+00 : f32
    %11 = vector.broadcast %cst_27 : f32 to vector<2x4x16x16xf32>
    %12 = arith.subf %11, %10 : vector<2x4x16x16xf32>
    %cst_28 = arith.constant 0.000000e+00 : f32
    %13 = vector.broadcast %cst_28 : f32 to vector<2x4x16x16xf32>
    %14 = arith.subf %13, %10 : vector<2x4x16x16xf32>
    %c0_29 = arith.constant 0 : index
    %c0_30 = arith.constant 0 : index
    %c0_31 = arith.constant 0 : index
    %c1_32 = arith.constant 1 : index
    %15 = vector.load %arg3[%c0_29, %c0_30, %c0_31, %c1_32] : memref<2x4x18x18xf32, #tpu.memory_space<vmem>>, vector<2x4x16x16xf32>
    %cst_33 = arith.constant -1.000000e+00 : f32
    %16 = vector.broadcast %cst_33 : f32 to vector<2x4x16x16xf32>
    %17 = arith.mulf %16, %15 : vector<2x4x16x16xf32>
    %18 = arith.addf %14, %17 : vector<2x4x16x16xf32>
    %c0_34 = arith.constant 0 : index
    %c0_35 = arith.constant 0 : index
    %c0_36 = arith.constant 0 : index
    %c2 = arith.constant 2 : index
    %19 = vector.load %arg3[%c0_34, %c0_35, %c0_36, %c2] : memref<2x4x18x18xf32, #tpu.memory_space<vmem>>, vector<2x4x16x16xf32>
    %cst_37 = arith.constant 5.000000e-01 : f32
    %20 = vector.broadcast %cst_37 : f32 to vector<2x4x16x16xf32>
    %21 = arith.mulf %20, %19 : vector<2x4x16x16xf32>
    %22 = arith.addf %12, %21 : vector<2x4x16x16xf32>
    %cst_38 = arith.constant 0.000000e+00 : f32
    %23 = vector.broadcast %cst_38 : f32 to vector<2x4x16x16xf32>
    %24 = arith.subf %23, %21 : vector<2x4x16x16xf32>
    %25 = arith.addf %18, %24 : vector<2x4x16x16xf32>
    %c0_39 = arith.constant 0 : index
    %c0_40 = arith.constant 0 : index
    %c1_41 = arith.constant 1 : index
    %c0_42 = arith.constant 0 : index
    %26 = vector.load %arg3[%c0_39, %c0_40, %c1_41, %c0_42] : memref<2x4x18x18xf32, #tpu.memory_space<vmem>>, vector<2x4x16x16xf32>
    %cst_43 = arith.constant -1.000000e+00 : f32
    %27 = vector.broadcast %cst_43 : f32 to vector<2x4x16x16xf32>
    %28 = arith.mulf %27, %26 : vector<2x4x16x16xf32>
    %29 = arith.addf %22, %28 : vector<2x4x16x16xf32>
    %c0_44 = arith.constant 0 : index
    %c0_45 = arith.constant 0 : index
    %c1_46 = arith.constant 1 : index
    %c2_47 = arith.constant 2 : index
    %30 = vector.load %arg3[%c0_44, %c0_45, %c1_46, %c2_47] : memref<2x4x18x18xf32, #tpu.memory_space<vmem>>, vector<2x4x16x16xf32>
    %cst_48 = arith.constant 1.000000e+00 : f32
    %31 = vector.broadcast %cst_48 : f32 to vector<2x4x16x16xf32>
    %32 = arith.mulf %31, %30 : vector<2x4x16x16xf32>
    %33 = arith.addf %29, %32 : vector<2x4x16x16xf32>
    %c0_49 = arith.constant 0 : index
    %c0_50 = arith.constant 0 : index
    %c2_51 = arith.constant 2 : index
    %c0_52 = arith.constant 0 : index
    %34 = vector.load %arg3[%c0_49, %c0_50, %c2_51, %c0_52] : memref<2x4x18x18xf32, #tpu.memory_space<vmem>>, vector<2x4x16x16xf32>
    %cst_53 = arith.constant 5.000000e-01 : f32
    %35 = vector.broadcast %cst_53 : f32 to vector<2x4x16x16xf32>
    %36 = arith.mulf %35, %34 : vector<2x4x16x16xf32>
    %cst_54 = arith.constant 0.000000e+00 : f32
    %37 = vector.broadcast %cst_54 : f32 to vector<2x4x16x16xf32>
    %38 = arith.subf %37, %36 : vector<2x4x16x16xf32>
    %39 = arith.addf %33, %38 : vector<2x4x16x16xf32>
    %40 = arith.addf %25, %36 : vector<2x4x16x16xf32>
    %c0_55 = arith.constant 0 : index
    %c0_56 = arith.constant 0 : index
    %c2_57 = arith.constant 2 : index
    %c1_58 = arith.constant 1 : index
    %41 = vector.load %arg3[%c0_55, %c0_56, %c2_57, %c1_58] : memref<2x4x18x18xf32, #tpu.memory_space<vmem>>, vector<2x4x16x16xf32>
    %cst_59 = arith.constant 1.000000e+00 : f32
    %42 = vector.broadcast %cst_59 : f32 to vector<2x4x16x16xf32>
    %43 = arith.mulf %42, %41 : vector<2x4x16x16xf32>
    %44 = arith.addf %40, %43 : vector<2x4x16x16xf32>
    %c0_60 = arith.constant 0 : index
    %c0_61 = arith.constant 0 : index
    %c2_62 = arith.constant 2 : index
    %c2_63 = arith.constant 2 : index
    %45 = vector.load %arg3[%c0_60, %c0_61, %c2_62, %c2_63] : memref<2x4x18x18xf32, #tpu.memory_space<vmem>>, vector<2x4x16x16xf32>
    %cst_64 = arith.constant 5.000000e-01 : f32
    %46 = vector.broadcast %cst_64 : f32 to vector<2x4x16x16xf32>
    %47 = arith.mulf %46, %45 : vector<2x4x16x16xf32>
    %48 = arith.addf %39, %47 : vector<2x4x16x16xf32>
    %49 = arith.addf %44, %47 : vector<2x4x16x16xf32>
    %50 = arith.mulf %48, %48 : vector<2x4x16x16xf32>
    %51 = arith.mulf %49, %49 : vector<2x4x16x16xf32>
    %52 = arith.addf %50, %51 : vector<2x4x16x16xf32>
    %53 = math.sqrt %52 : vector<2x4x16x16xf32>
    %cst_65 = arith.constant dense<0.000000e+00> : vector<2x4x16xf32>
    %54 = vector.multi_reduction <add>, %53, %cst_65 [3] : vector<2x4x16x16xf32> to vector<2x4x16xf32>
    %cst_66 = arith.constant dense<0.000000e+00> : vector<2x4xf32>
    %55 = vector.multi_reduction <add>, %54, %cst_66 [2] : vector<2x4x16xf32> to vector<2x4xf32>
    %56 = vector.shape_cast %55 : vector<2x4xf32> to vector<2x4x1xf32>
    %cst_67 = arith.constant dense<0.000000e+00> : vector<2x4x16xf32>
    %57 = vector.multi_reduction <add>, %52, %cst_67 [3] : vector<2x4x16x16xf32> to vector<2x4x16xf32>
    %cst_68 = arith.constant dense<0.000000e+00> : vector<2x4xf32>
    %58 = vector.multi_reduction <add>, %57, %cst_68 [2] : vector<2x4x16xf32> to vector<2x4xf32>
    %59 = vector.shape_cast %58 : vector<2x4xf32> to vector<2x4x1xf32>
    %cst_69 = arith.constant 3.906250e-03 : f32
    %60 = vector.broadcast %cst_69 : f32 to vector<2x4x1xf32>
    %61 = arith.mulf %56, %60 : vector<2x4x1xf32>
    %cst_70 = arith.constant 3.906250e-03 : f32
    %62 = vector.broadcast %cst_70 : f32 to vector<2x4x1xf32>
    %63 = arith.mulf %59, %62 : vector<2x4x1xf32>
    %64 = arith.mulf %61, %61 : vector<2x4x1xf32>
    %65 = arith.subf %63, %64 : vector<2x4x1xf32>
    %cst_71 = arith.constant 0.000000e+00 : f32
    %66 = vector.broadcast %cst_71 : f32 to vector<2x4x1xf32>
    %67 = arith.maximumf %65, %66 : vector<2x4x1xf32>
    %68 = math.sqrt %67 : vector<2x4x1xf32>
    %c0_72 = arith.constant 0 : index
    %c0_73 = arith.constant 0 : index
    %c0_74 = arith.constant 0 : index
    %69 = vector.load %arg2[%c0_72, %c0_73, %c0_74] : memref<2x4x1xf32, #tpu.memory_space<vmem>>, vector<2x4x1xf32>
    tpu.vector_store %arg2[%c0_72, %c0_73, %c0_74], %68 {strides = array<i32>} : memref<2x4x1xf32, #tpu.memory_space<vmem>>, vector<2x4x1xf32>,
    return
  }
  func.func @transform_0(%arg0: i32) -> (i32, i32, i32, i32) {
    %c0_i32 = arith.constant 0 : i32
    %c0_i32_0 = arith.constant 0 : i32
    %c0_i32_1 = arith.constant 0 : i32
    %c0_i32_2 = arith.constant 0 : i32
    return %arg0, %c0_i32, %c0_i32_0, %c0_i32_1 : i32, i32, i32, i32
  }
  func.func @transform_1(%arg0: i32) -> (i32, i32, i32) {
    %c0_i32 = arith.constant 0 : i32
    %c0_i32_0 = arith.constant 0 : i32
    %c0_i32_1 = arith.constant 0 : i32
    return %arg0, %c0_i32, %c0_i32_0 : i32, i32, i32
  }
}

</mosaic_0001>

<llo_original>
// kernel: tpu_custom_call.1
$region0: #{tpu_custom_call.1}
  #allocation0 [shape = 'u32[]', space=smem, size = 0x4, offset = 0x4, fixed_abs, tag = 'smem constant byte address 0x4 - core index']
  #allocation1 [shape = 'u32[144,128]{1,0:T(1,128)}', space=vmem, size = 0x12000, scoped, tag = 'internal scratch']
  #allocation2 [shape = 'f32[2,4,18,18]{3,2,1,0:T(8,128)}', space=vmem, size = 0x18000, scoped, tag = 'scratch operand']
  %s0 = inlined_call_operand.hbm [shape: f32[2,4,16,16], index: 0, kind: input, shape index: {}]
  %s1 = inlined_call_operand.vmem [shape: f32[2,4,1], index: 1, kind: output, shape index: {}]
  %s2 = sld [smem:[#allocation0]]
  $region18: #{tpu_custom_call.1} parent=0
    _
  %s4 = ssub.s32 1, %s2
  %s5 = scalar_select 0, %s4, %s2
  $region1: #{tpu_custom_call.1} parent=0
    #allocation3 [shape = 'u8[65536]{0}', space=vmem, size = 0x10000, scoped, tag = 'input window, operand 0, single buffered']
    #allocation4 [shape = 's32[1]{0}', space=sflag, size = 0x4, scoped, tag = 'scoped memory for tpu_custom_call.1']
    %6 = vsyncpa [#allocation4], 0
    // Predicated region
    $region2: #{tpu_custom_call.1} parent=1 // pred_check
      _
    $region3: #{tpu_custom_call.1} parent=1 // pred_check_branch
      %8 = sbr.rel (0) target = $region5
    $region4: #{tpu_custom_call.1} parent=1 // pred_region
      %s10 = ssub.s32 2048, 2048
      %11 = vsyncadd [#allocation4], %s10
      %s12 = sshll.u32 [#allocation3], 4
      %s13 = int_to_ptr.vmem [resolvable:$true] %s12
      %18 = dma.hbm_to_vmem [thread:$0]  %s0, 2048, %s13, [#allocation4], 128, 128, 8
    $region5: #{tpu_custom_call.1} parent=1 // pred_fallthru
      _
    // Predicated region
    $region6: #{tpu_custom_call.1} parent=1 // pred_check
      _
    $region7: #{tpu_custom_call.1} parent=1 // pred_check_branch
      %20 = sbr.rel (0) target = $region9
    $region8: #{tpu_custom_call.1} parent=1 // pred_region
      %21 = dma.done [#allocation4], 2048
    $region9: #{tpu_custom_call.1} parent=1 // pred_fallthru
      _
    %vm22 = vcmask 139264
    %23 = vst.msk [vmem:[#allocation2] sm:$0x1] %vm22, 0.0
    %24 = vst.msk [vmem:[#allocation2 + $0x18] sm:$0x1] %vm22, 0.0
    %25 = vst.msk [vmem:[#allocation2 + $0x30] sm:$0x1] %vm22, 0.0
    %26 = vst.msk [vmem:[#allocation2 + $0x48] sm:$0x1] %vm22, 0.0
    %27 = vst.msk [vmem:[#allocation2 + $0x60] sm:$0x1] %vm22, 0.0
    %28 = vst.msk [vmem:[#allocation2 + $0x78] sm:$0x1] %vm22, 0.0
    %29 = vst.msk [vmem:[#allocation2 + $0x90] sm:$0x1] %vm22, 0.0
    %30 = vst.msk [vmem:[#allocation2 + $0xa8] sm:$0x1] %vm22, 0.0
    %31 = vst.msk [vmem:[#allocation2 + $0x11] sm:$0x1] %vm22, 0.0
    %32 = vst.msk [vmem:[#allocation2 + $0x29] sm:$0x1] %vm22, 0.0
    %33 = vst.msk [vmem:[#allocation2 + $0x41] sm:$0x1] %vm22, 0.0
    %34 = vst.msk [vmem:[#allocation2 + $0x59] sm:$0x1] %vm22, 0.0
    %35 = vst.msk [vmem:[#allocation2 + $0x71] sm:$0x1] %vm22, 0.0
    %36 = vst.msk [vmem:[#allocation2 + $0x89] sm:$0x1] %vm22, 0.0
    %37 = vst.msk [vmem:[#allocation2 + $0xa1] sm:$0x1] %vm22, 0.0
    %38 = vst.msk [vmem:[#allocation2 + $0xb9] sm:$0x1] %vm22, 0.0
    %vm39 = vcmask 7168
    %40 = vst.msk [vmem:[#allocation2] sm:$0xff] %vm39, 0.0
    %41 = vst.msk [vmem:[#allocation2 + $0x8] sm:$0xff] %vm39, 0.0
    %vm42 = vcmask 1024
    %43 = vst.msk [vmem:[#allocation2 + $0x10] sm:$0x3] %vm42, 0.0
    %44 = vst.msk [vmem:[#allocation2 + $0x18] sm:$0xff] %vm39, 0.0
    %45 = vst.msk [vmem:[#allocation2 + $0x20] sm:$0xff] %vm39, 0.0
    %46 = vst.msk [vmem:[#allocation2 + $0x28] sm:$0x3] %vm42, 0.0
    %47 = vst.msk [vmem:[#allocation2 + $0x30] sm:$0xff] %vm39, 0.0
    %48 = vst.msk [vmem:[#allocation2 + $0x38] sm:$0xff] %vm39, 0.0
    %49 = vst.msk [vmem:[#allocation2 + $0x40] sm:$0x3] %vm42, 0.0
    %50 = vst.msk [vmem:[#allocation2 + $0x48] sm:$0xff] %vm39, 0.0
    %51 = vst.msk [vmem:[#allocation2 + $0x50] sm:$0xff] %vm39, 0.0
    %52 = vst.msk [vmem:[#allocation2 + $0x58] sm:$0x3] %vm42, 0.0
    %53 = vst.msk [vmem:[#allocation2 + $0x60] sm:$0xff] %vm39, 0.0
    %54 = vst.msk [vmem:[#allocation2 + $0x68] sm:$0xff] %vm39, 0.0
    %55 = vst.msk [vmem:[#allocation2 + $0x70] sm:$0x3] %vm42, 0.0
    %56 = vst.msk [vmem:[#allocation2 + $0x78] sm:$0xff] %vm39, 0.0
    %57 = vst.msk [vmem:[#allocation2 + $0x80] sm:$0xff] %vm39, 0.0
    %58 = vst.msk [vmem:[#allocation2 + $0x88] sm:$0x3] %vm42, 0.0
    %59 = vst.msk [vmem:[#allocation2 + $0x90] sm:$0xff] %vm39, 0.0
    %60 = vst.msk [vmem:[#allocation2 + $0x98] sm:$0xff] %vm39, 0.0
    %61 = vst.msk [vmem:[#allocation2 + $0xa0] sm:$0x3] %vm42, 0.0
    %62 = vst.msk [vmem:[#allocation2 + $0xa8] sm:$0xff] %vm39, 0.0
    %63 = vst.msk [vmem:[#allocation2 + $0xb0] sm:$0xff] %vm39, 0.0
    %64 = vst.msk [vmem:[#allocation2 + $0xb8] sm:$0x3] %vm42, 0.0
    %vm65 = vcmask 146568
    %66 = vst.msk [vmem:[#allocation2] sm:$0xff] %vm65, 0.0
    %67 = vst.msk [vmem:[#allocation2 + $0x8] sm:$0xff] %vm65, 0.0
    %vm68 = vcmask 140424
    %69 = vst.msk [vmem:[#allocation2 + $0x10] sm:$0x3] %vm68, 0.0
    %70 = vst.msk [vmem:[#allocation2 + $0x18] sm:$0xff] %vm65, 0.0
    %71 = vst.msk [vmem:[#allocation2 + $0x20] sm:$0xff] %vm65, 0.0
    %72 = vst.msk [vmem:[#allocation2 + $0x28] sm:$0x3] %vm68, 0.0
    %73 = vst.msk [vmem:[#allocation2 + $0x30] sm:$0xff] %vm65, 0.0
    %74 = vst.msk [vmem:[#allocation2 + $0x38] sm:$0xff] %vm65, 0.0
    %75 = vst.msk [vmem:[#allocation2 + $0x40] sm:$0x3] %vm68, 0.0
    %76 = vst.msk [vmem:[#allocation2 + $0x48] sm:$0xff] %vm65, 0.0
    %77 = vst.msk [vmem:[#allocation2 + $0x50] sm:$0xff] %vm65, 0.0
    %78 = vst.msk [vmem:[#allocation2 + $0x58] sm:$0x3] %vm68, 0.0
    %79 = vst.msk [vmem:[#allocation2 + $0x60] sm:$0xff] %vm65, 0.0
    %80 = vst.msk [vmem:[#allocation2 + $0x68] sm:$0xff] %vm65, 0.0
    %81 = vst.msk [vmem:[#allocation2 + $0x70] sm:$0x3] %vm68, 0.0
    %82 = vst.msk [vmem:[#allocation2 + $0x78] sm:$0xff] %vm65, 0.0
    %83 = vst.msk [vmem:[#allocation2 + $0x80] sm:$0xff] %vm65, 0.0
    %84 = vst.msk [vmem:[#allocation2 + $0x88] sm:$0x3] %vm68, 0.0
    %85 = vst.msk [vmem:[#allocation2 + $0x90] sm:$0xff] %vm65, 0.0
    %86 = vst.msk [vmem:[#allocation2 + $0x98] sm:$0xff] %vm65, 0.0
    %87 = vst.msk [vmem:[#allocation2 + $0xa0] sm:$0x3] %vm68, 0.0
    %88 = vst.msk [vmem:[#allocation2 + $0xa8] sm:$0xff] %vm65, 0.0
    %89 = vst.msk [vmem:[#allocation2 + $0xb0] sm:$0xff] %vm65, 0.0
    %90 = vst.msk [vmem:[#allocation2 + $0xb8] sm:$0x3] %vm68, 0.0
    %v91 = vld [vmem:[#allocation3] sm:$0xff]
    %v92 = vld [vmem:[#allocation3 + $0x8] sm:$0xff]
    %v93 = vld [vmem:[#allocation3 + $0x10] sm:$0xff]
    %v94 = vld [vmem:[#allocation3 + $0x18] sm:$0xff]
    %v95 = vld [vmem:[#allocation3 + $0x20] sm:$0xff]
    %v96 = vld [vmem:[#allocation3 + $0x28] sm:$0xff]
    %v97 = vld [vmem:[#allocation3 + $0x30] sm:$0xff]
    %v98 = vld [vmem:[#allocation3 + $0x38] sm:$0xff]
    %v99 = vld [vmem:[#allocation3 + $0x40] sm:$0xff]
    %v100 = vld [vmem:[#allocation3 + $0x48] sm:$0xff]
    %v101 = vld [vmem:[#allocation3 + $0x50] sm:$0xff]
    %v102 = vld [vmem:[#allocation3 + $0x58] sm:$0xff]
    %v103 = vld [vmem:[#allocation3 + $0x60] sm:$0xff]
    %v104 = vld [vmem:[#allocation3 + $0x68] sm:$0xff]
    %v105 = vld [vmem:[#allocation3 + $0x70] sm:$0xff]
    %v106 = vld [vmem:[#allocation3 + $0x78] sm:$0xff]
    %123 = vrot.lane.b32.xlu0 %v91, 1
    %v124 = vpop.permute.xlu0 %123
    %125 = vrot.lane.b32.xlu0 %v92, 1
    %v126 = vpop.permute.xlu0 %125
    %127 = vrot.lane.b32.xlu0 %v93, 1
    %v128 = vpop.permute.xlu0 %127
    %129 = vrot.lane.b32.xlu0 %v94, 1
    %v130 = vpop.permute.xlu0 %129
    %131 = vrot.lane.b32.xlu0 %v95, 1
    %v132 = vpop.permute.xlu0 %131
    %133 = vrot.lane.b32.xlu0 %v96, 1
    %v134 = vpop.permute.xlu0 %133
    %135 = vrot.lane.b32.xlu0 %v97, 1
    %v136 = vpop.permute.xlu0 %135
    %137 = vrot.lane.b32.xlu0 %v98, 1
    %v138 = vpop.permute.xlu0 %137
    %139 = vrot.lane.b32.xlu0 %v99, 1
    %v140 = vpop.permute.xlu0 %139
    %141 = vrot.lane.b32.xlu0 %v100, 1
    %v142 = vpop.permute.xlu0 %141
    %143 = vrot.lane.b32.xlu0 %v101, 1
    %v144 = vpop.permute.xlu0 %143
    %145 = vrot.lane.b32.xlu0 %v102, 1
    %v146 = vpop.permute.xlu0 %145
    %147 = vrot.lane.b32.xlu0 %v103, 1
    %v148 = vpop.permute.xlu0 %147
    %149 = vrot.lane.b32.xlu0 %v104, 1
    %v150 = vpop.permute.xlu0 %149
    %151 = vrot.lane.b32.xlu0 %v105, 1
    %v152 = vpop.permute.xlu0 %151
    %153 = vrot.lane.b32.xlu0 %v106, 1
    %v154 = vpop.permute.xlu0 %153
    %vm171 = vcmask 138248
    %172 = vst.msk [vmem:[#allocation2 + $0x1] sm:$0xff] %vm171, %v124
    %173 = vst.msk [vmem:[#allocation2 + $0x9] sm:$0xff] %vm171, %v126
    %174 = vst.msk [vmem:[#allocation2 + $0x19] sm:$0xff] %vm171, %v128
    %175 = vst.msk [vmem:[#allocation2 + $0x21] sm:$0xff] %vm171, %v130
    %176 = vst.msk [vmem:[#allocation2 + $0x31] sm:$0xff] %vm171, %v132
    %177 = vst.msk [vmem:[#allocation2 + $0x39] sm:$0xff] %vm171, %v134
    %178 = vst.msk [vmem:[#allocation2 + $0x49] sm:$0xff] %vm171, %v136
    %179 = vst.msk [vmem:[#allocation2 + $0x51] sm:$0xff] %vm171, %v138
    %180 = vst.msk [vmem:[#allocation2 + $0x61] sm:$0xff] %vm171, %v140
    %181 = vst.msk [vmem:[#allocation2 + $0x69] sm:$0xff] %vm171, %v142
    %182 = vst.msk [vmem:[#allocation2 + $0x79] sm:$0xff] %vm171, %v144
    %183 = vst.msk [vmem:[#allocation2 + $0x81] sm:$0xff] %vm171, %v146
    %184 = vst.msk [vmem:[#allocation2 + $0x91] sm:$0xff] %vm171, %v148
    %185 = vst.msk [vmem:[#allocation2 + $0x99] sm:$0xff] %vm171, %v150
    %186 = vst.msk [vmem:[#allocation2 + $0xa9] sm:$0xff] %vm171, %v152
    %187 = vst.msk [vmem:[#allocation2 + $0xb1] sm:$0xff] %vm171, %v154
    %v188 = vld [vmem:[#allocation2] sm:$0xff]
    %v189 = vld [vmem:[#allocation2 + $0x8] sm:$0xff]
    %v190 = vld [vmem:[#allocation2 + $0x18] sm:$0xff]
    %v191 = vld [vmem:[#allocation2 + $0x20] sm:$0xff]
    %v192 = vld [vmem:[#allocation2 + $0x30] sm:$0xff]
    %v193 = vld [vmem:[#allocation2 + $0x38] sm:$0xff]
    %v194 = vld [vmem:[#allocation2 + $0x48] sm:$0xff]
    %v195 = vld [vmem:[#allocation2 + $0x50] sm:$0xff]
    %v196 = vld [vmem:[#allocation2 + $0x60] sm:$0xff]
    %v197 = vld [vmem:[#allocation2 + $0x68] sm:$0xff]
    %v198 = vld [vmem:[#allocation2 + $0x78] sm:$0xff]
    %v199 = vld [vmem:[#allocation2 + $0x80] sm:$0xff]
    %v200 = vld [vmem:[#allocation2 + $0x90] sm:$0xff]
    %v201 = vld [vmem:[#allocation2 + $0x98] sm:$0xff]
    %v202 = vld [vmem:[#allocation2 + $0xa8] sm:$0xff]
    %v203 = vld [vmem:[#allocation2 + $0xb0] sm:$0xff]
    %v204 = vmul.f32 %v188, 0.5
    %v205 = vmul.f32 %v189, 0.5
    %v206 = vmul.f32 %v190, 0.5
    %v207 = vmul.f32 %v191, 0.5
    %v208 = vmul.f32 %v192, 0.5
    %v209 = vmul.f32 %v193, 0.5
    %v210 = vmul.f32 %v194, 0.5
    %v211 = vmul.f32 %v195, 0.5
    %v212 = vmul.f32 %v196, 0.5
    %v213 = vmul.f32 %v197, 0.5
    %v214 = vmul.f32 %v198, 0.5
    %v215 = vmul.f32 %v199, 0.5
    %v216 = vmul.f32 %v200, 0.5
    %v217 = vmul.f32 %v201, 0.5
    %v218 = vmul.f32 %v202, 0.5
    %v219 = vmul.f32 %v203, 0.5
    %v220 = vsub.f32 0.0, %v204
    %v221 = vsub.f32 0.0, %v205
    %v222 = vsub.f32 0.0, %v206
    %v223 = vsub.f32 0.0, %v207
    %v224 = vsub.f32 0.0, %v208
    %v225 = vsub.f32 0.0, %v209
    %v226 = vsub.f32 0.0, %v210
    %v227 = vsub.f32 0.0, %v211
    %v228 = vsub.f32 0.0, %v212
    %v229 = vsub.f32 0.0, %v213
    %v230 = vsub.f32 0.0, %v214
    %v231 = vsub.f32 0.0, %v215
    %v232 = vsub.f32 0.0, %v216
    %v233 = vsub.f32 0.0, %v217
    %v234 = vsub.f32 0.0, %v218
    %v235 = vsub.f32 0.0, %v219
    %v236 = vmul.f32 %v188, -1.0
    %v237 = vmul.f32 %v189, -1.0
    %v238 = vmul.f32 %v190, -1.0
    %v239 = vmul.f32 %v191, -1.0
    %v240 = vmul.f32 %v192, -1.0
    %v241 = vmul.f32 %v193, -1.0
    %v242 = vmul.f32 %v194, -1.0
    %v243 = vmul.f32 %v195, -1.0
    %v244 = vmul.f32 %v196, -1.0
    %v245 = vmul.f32 %v197, -1.0
    %v246 = vmul.f32 %v198, -1.0
    %v247 = vmul.f32 %v199, -1.0
    %v248 = vmul.f32 %v200, -1.0
    %v249 = vmul.f32 %v201, -1.0
    %v250 = vmul.f32 %v202, -1.0
    %v251 = vmul.f32 %v203, -1.0
    %268 = vrot.lane.b32.xlu0 %v236, 127
    %v269 = vpop.permute.xlu0 %268
    %270 = vrot.lane.b32.xlu0 %v237, 127
    %v271 = vpop.permute.xlu0 %270
    %272 = vrot.lane.b32.xlu0 %v238, 127
    %v273 = vpop.permute.xlu0 %272
    %274 = vrot.lane.b32.xlu0 %v239, 127
    %v275 = vpop.permute.xlu0 %274
    %276 = vrot.lane.b32.xlu0 %v240, 127
    %v277 = vpop.permute.xlu0 %276
    %278 = vrot.lane.b32.xlu0 %v241, 127
    %v279 = vpop.permute.xlu0 %278
    %280 = vrot.lane.b32.xlu0 %v242, 127
    %v281 = vpop.permute.xlu0 %280
    %282 = vrot.lane.b32.xlu0 %v243, 127
    %v283 = vpop.permute.xlu0 %282
    %284 = vrot.lane.b32.xlu0 %v244, 127
    %v285 = vpop.permute.xlu0 %284
    %286 = vrot.lane.b32.xlu0 %v245, 127
    %v287 = vpop.permute.xlu0 %286
    %288 = vrot.lane.b32.xlu0 %v246, 127
    %v289 = vpop.permute.xlu0 %288
    %290 = vrot.lane.b32.xlu0 %v247, 127
    %v291 = vpop.permute.xlu0 %290
    %292 = vrot.lane.b32.xlu0 %v248, 127
    %v293 = vpop.permute.xlu0 %292
    %294 = vrot.lane.b32.xlu0 %v249, 127
    %v295 = vpop.permute.xlu0 %294
    %296 = vrot.lane.b32.xlu0 %v250, 127
    %v297 = vpop.permute.xlu0 %296
    %298 = vrot.lane.b32.xlu0 %v251, 127
    %v299 = vpop.permute.xlu0 %298
    %v316 = vadd.f32 %v220, %v269
    %v317 = vadd.f32 %v221, %v271
    %v318 = vadd.f32 %v222, %v273
    %v319 = vadd.f32 %v223, %v275
    %v320 = vadd.f32 %v224, %v277
    %v321 = vadd.f32 %v225, %v279
    %v322 = vadd.f32 %v226, %v281
    %v323 = vadd.f32 %v227, %v283
    %v324 = vadd.f32 %v228, %v285
    %v325 = vadd.f32 %v229, %v287
    %v326 = vadd.f32 %v230, %v289
    %v327 = vadd.f32 %v231, %v291
    %v328 = vadd.f32 %v232, %v293
    %v329 = vadd.f32 %v233, %v295
    %v330 = vadd.f32 %v234, %v297
    %v331 = vadd.f32 %v235, %v299
    %348 = vrot.lane.b32.xlu0 %v204, 126
    %v349 = vpop.permute.xlu0 %348
    %350 = vrot.lane.b32.xlu0 %v205, 126
    %v351 = vpop.permute.xlu0 %350
    %352 = vrot.lane.b32.xlu0 %v206, 126
    %v353 = vpop.permute.xlu0 %352
    %354 = vrot.lane.b32.xlu0 %v207, 126
    %v355 = vpop.permute.xlu0 %354
    %356 = vrot.lane.b32.xlu0 %v208, 126
    %v357 = vpop.permute.xlu0 %356
    %358 = vrot.lane.b32.xlu0 %v209, 126
    %v359 = vpop.permute.xlu0 %358
    %360 = vrot.lane.b32.xlu0 %v210, 126
    %v361 = vpop.permute.xlu0 %360
    %362 = vrot.lane.b32.xlu0 %v211, 126
    %v363 = vpop.permute.xlu0 %362
    %364 = vrot.lane.b32.xlu0 %v212, 126
    %v365 = vpop.permute.xlu0 %364
    %366 = vrot.lane.b32.xlu0 %v213, 126
    %v367 = vpop.permute.xlu0 %366
    %368 = vrot.lane.b32.xlu0 %v214, 126
    %v369 = vpop.permute.xlu0 %368
    %370 = vrot.lane.b32.xlu0 %v215, 126
    %v371 = vpop.permute.xlu0 %370
    %372 = vrot.lane.b32.xlu0 %v216, 126
    %v373 = vpop.permute.xlu0 %372
    %374 = vrot.lane.b32.xlu0 %v217, 126
    %v375 = vpop.permute.xlu0 %374
    %376 = vrot.lane.b32.xlu0 %v218, 126
    %v377 = vpop.permute.xlu0 %376
    %378 = vrot.lane.b32.xlu0 %v219, 126
    %v379 = vpop.permute.xlu0 %378
    %v396 = vadd.f32 %v220, %v349
    %v397 = vadd.f32 %v221, %v351
    %v398 = vadd.f32 %v222, %v353
    %v399 = vadd.f32 %v223, %v355
    %v400 = vadd.f32 %v224, %v357
    %v401 = vadd.f32 %v225, %v359
    %v402 = vadd.f32 %v226, %v361
    %v403 = vadd.f32 %v227, %v363
    %v404 = vadd.f32 %v228, %v365
    %v405 = vadd.f32 %v229, %v367
    %v406 = vadd.f32 %v230, %v369
    %v407 = vadd.f32 %v231, %v371
    %v408 = vadd.f32 %v232, %v373
    %v409 = vadd.f32 %v233, %v375
    %v410 = vadd.f32 %v234, %v377
    %v411 = vadd.f32 %v235, %v379
    %428 = vrot.lane.b32.xlu0 %v220, 126
    %v429 = vpop.permute.xlu0 %428
    %430 = vrot.lane.b32.xlu0 %v221, 126
    %v431 = vpop.permute.xlu0 %430
    %432 = vrot.lane.b32.xlu0 %v222, 126
    %v433 = vpop.permute.xlu0 %432
    %434 = vrot.lane.b32.xlu0 %v223, 126
    %v435 = vpop.permute.xlu0 %434
    %436 = vrot.lane.b32.xlu0 %v224, 126
    %v437 = vpop.permute.xlu0 %436
    %438 = vrot.lane.b32.xlu0 %v225, 126
    %v439 = vpop.permute.xlu0 %438
    %440 = vrot.lane.b32.xlu0 %v226, 126
    %v441 = vpop.permute.xlu0 %440
    %442 = vrot.lane.b32.xlu0 %v227, 126
    %v443 = vpop.permute.xlu0 %442
    %444 = vrot.lane.b32.xlu0 %v228, 126
    %v445 = vpop.permute.xlu0 %444
    %446 = vrot.lane.b32.xlu0 %v229, 126
    %v447 = vpop.permute.xlu0 %446
    %448 = vrot.lane.b32.xlu0 %v230, 126
    %v449 = vpop.permute.xlu0 %448
    %450 = vrot.lane.b32.xlu0 %v231, 126
    %v451 = vpop.permute.xlu0 %450
    %452 = vrot.lane.b32.xlu0 %v232, 126
    %v453 = vpop.permute.xlu0 %452
    %454 = vrot.lane.b32.xlu0 %v233, 126
    %v455 = vpop.permute.xlu0 %454
    %456 = vrot.lane.b32.xlu0 %v234, 126
    %v457 = vpop.permute.xlu0 %456
    %458 = vrot.lane.b32.xlu0 %v235, 126
    %v459 = vpop.permute.xlu0 %458
    %v476 = vadd.f32 %v316, %v429
    %v477 = vadd.f32 %v317, %v431
    %v478 = vadd.f32 %v318, %v433
    %v479 = vadd.f32 %v319, %v435
    %v480 = vadd.f32 %v320, %v437
    %v481 = vadd.f32 %v321, %v439
    %v482 = vadd.f32 %v322, %v441
    %v483 = vadd.f32 %v323, %v443
    %v484 = vadd.f32 %v324, %v445
    %v485 = vadd.f32 %v325, %v447
    %v486 = vadd.f32 %v326, %v449
    %v487 = vadd.f32 %v327, %v451
    %v488 = vadd.f32 %v328, %v453
    %v489 = vadd.f32 %v329, %v455
    %v490 = vadd.f32 %v330, %v457
    %v491 = vadd.f32 %v331, %v459
    %v492 = vld [vmem:[#allocation2 + $0x1] sm:$0xff]
    %v493 = vld [vmem:[#allocation2 + $0x9] sm:$0xff]
    %v494 = vld [vmem:[#allocation2 + $0x19] sm:$0xff]
    %v495 = vld [vmem:[#allocation2 + $0x21] sm:$0xff]
    %v496 = vld [vmem:[#allocation2 + $0x31] sm:$0xff]
    %v497 = vld [vmem:[#allocation2 + $0x39] sm:$0xff]
    %v498 = vld [vmem:[#allocation2 + $0x49] sm:$0xff]
    %v499 = vld [vmem:[#allocation2 + $0x51] sm:$0xff]
    %v500 = vld [vmem:[#allocation2 + $0x61] sm:$0xff]
    %v501 = vld [vmem:[#allocation2 + $0x69] sm:$0xff]
    %v502 = vld [vmem:[#allocation2 + $0x79] sm:$0xff]
    %v503 = vld [vmem:[#allocation2 + $0x81] sm:$0xff]
    %v504 = vld [vmem:[#allocation2 + $0x91] sm:$0xff]
    %v505 = vld [vmem:[#allocation2 + $0x99] sm:$0xff]
    %v506 = vld [vmem:[#allocation2 + $0xa9] sm:$0xff]
    %v507 = vld [vmem:[#allocation2 + $0xb1] sm:$0xff]
    %v508 = vmul.f32 %v492, -1.0
    %v509 = vmul.f32 %v493, -1.0
    %v510 = vmul.f32 %v494, -1.0
    %v511 = vmul.f32 %v495, -1.0
    %v512 = vmul.f32 %v496, -1.0
    %v513 = vmul.f32 %v497, -1.0
    %v514 = vmul.f32 %v498, -1.0
    %v515 = vmul.f32 %v499, -1.0
    %v516 = vmul.f32 %v500, -1.0
    %v517 = vmul.f32 %v501, -1.0
    %v518 = vmul.f32 %v502, -1.0
    %v519 = vmul.f32 %v503, -1.0
    %v520 = vmul.f32 %v504, -1.0
    %v521 = vmul.f32 %v505, -1.0
    %v522 = vmul.f32 %v506, -1.0
    %v523 = vmul.f32 %v507, -1.0
    %v524 = vadd.f32 %v396, %v508
    %v525 = vadd.f32 %v397, %v509
    %v526 = vadd.f32 %v398, %v510
    %v527 = vadd.f32 %v399, %v511
    %v528 = vadd.f32 %v400, %v512
    %v529 = vadd.f32 %v401, %v513
    %v530 = vadd.f32 %v402, %v514
    %v531 = vadd.f32 %v403, %v515
    %v532 = vadd.f32 %v404, %v516
    %v533 = vadd.f32 %v405, %v517
    %v534 = vadd.f32 %v406, %v518
    %v535 = vadd.f32 %v407, %v519
    %v536 = vadd.f32 %v408, %v520
    %v537 = vadd.f32 %v409, %v521
    %v538 = vadd.f32 %v410, %v522
    %v539 = vadd.f32 %v411, %v523
    %556 = vrot.lane.b32.xlu0 %v492, 126
    %v557 = vpop.permute.xlu0 %556
    %558 = vrot.lane.b32.xlu0 %v493, 126
    %v559 = vpop.permute.xlu0 %558
    %560 = vrot.lane.b32.xlu0 %v494, 126
    %v561 = vpop.permute.xlu0 %560
    %562 = vrot.lane.b32.xlu0 %v495, 126
    %v563 = vpop.permute.xlu0 %562
    %564 = vrot.lane.b32.xlu0 %v496, 126
    %v565 = vpop.permute.xlu0 %564
    %566 = vrot.lane.b32.xlu0 %v497, 126
    %v567 = vpop.permute.xlu0 %566
    %568 = vrot.lane.b32.xlu0 %v498, 126
    %v569 = vpop.permute.xlu0 %568
    %570 = vrot.lane.b32.xlu0 %v499, 126
    %v571 = vpop.permute.xlu0 %570
    %572 = vrot.lane.b32.xlu0 %v500, 126
    %v573 = vpop.permute.xlu0 %572
    %574 = vrot.lane.b32.xlu0 %v501, 126
    %v575 = vpop.permute.xlu0 %574
    %576 = vrot.lane.b32.xlu0 %v502, 126
    %v577 = vpop.permute.xlu0 %576
    %578 = vrot.lane.b32.xlu0 %v503, 126
    %v579 = vpop.permute.xlu0 %578
    %580 = vrot.lane.b32.xlu0 %v504, 126
    %v581 = vpop.permute.xlu0 %580
    %582 = vrot.lane.b32.xlu0 %v505, 126
    %v583 = vpop.permute.xlu0 %582
    %584 = vrot.lane.b32.xlu0 %v506, 126
    %v585 = vpop.permute.xlu0 %584
    %586 = vrot.lane.b32.xlu0 %v507, 126
    %v587 = vpop.permute.xlu0 %586
    %v604 = vadd.f32 %v524, %v557
    %v605 = vadd.f32 %v525, %v559
    %v606 = vadd.f32 %v526, %v561
    %v607 = vadd.f32 %v527, %v563
    %v608 = vadd.f32 %v528, %v565
    %v609 = vadd.f32 %v529, %v567
    %v610 = vadd.f32 %v530, %v569
    %v611 = vadd.f32 %v531, %v571
    %v612 = vadd.f32 %v532, %v573
    %v613 = vadd.f32 %v533, %v575
    %v614 = vadd.f32 %v534, %v577
    %v615 = vadd.f32 %v535, %v579
    %v616 = vadd.f32 %v536, %v581
    %v617 = vadd.f32 %v537, %v583
    %v618 = vadd.f32 %v538, %v585
    %v619 = vadd.f32 %v539, %v587
    %v620 = vld [vmem:[#allocation2 + $0x2] sm:$0xff]
    %v621 = vld [vmem:[#allocation2 + $0xa] sm:$0xff]
    %v622 = vld [vmem:[#allocation2 + $0x1a] sm:$0xff]
    %v623 = vld [vmem:[#allocation2 + $0x22] sm:$0xff]
    %v624 = vld [vmem:[#allocation2 + $0x32] sm:$0xff]
    %v625 = vld [vmem:[#allocation2 + $0x3a] sm:$0xff]
    %v626 = vld [vmem:[#allocation2 + $0x4a] sm:$0xff]
    %v627 = vld [vmem:[#allocation2 + $0x52] sm:$0xff]
    %v628 = vld [vmem:[#allocation2 + $0x62] sm:$0xff]
    %v629 = vld [vmem:[#allocation2 + $0x6a] sm:$0xff]
    %v630 = vld [vmem:[#allocation2 + $0x7a] sm:$0xff]
    %v631 = vld [vmem:[#allocation2 + $0x82] sm:$0xff]
    %v632 = vld [vmem:[#allocation2 + $0x92] sm:$0xff]
    %v633 = vld [vmem:[#allocation2 + $0x9a] sm:$0xff]
    %v634 = vld [vmem:[#allocation2 + $0xaa] sm:$0xff]
    %v635 = vld [vmem:[#allocation2 + $0xb2] sm:$0xff]
    %v636 = vmul.f32 %v620, 0.5
    %v637 = vmul.f32 %v621, 0.5
    %v638 = vmul.f32 %v622, 0.5
    %v639 = vmul.f32 %v623, 0.5
    %v640 = vmul.f32 %v624, 0.5
    %v641 = vmul.f32 %v625, 0.5
    %v642 = vmul.f32 %v626, 0.5
    %v643 = vmul.f32 %v627, 0.5
    %v644 = vmul.f32 %v628, 0.5
    %v645 = vmul.f32 %v629, 0.5
    %v646 = vmul.f32 %v630, 0.5
    %v647 = vmul.f32 %v631, 0.5
    %v648 = vmul.f32 %v632, 0.5
    %v649 = vmul.f32 %v633, 0.5
    %v650 = vmul.f32 %v634, 0.5
    %v651 = vmul.f32 %v635, 0.5
    %v652 = vsub.f32 0.0, %v636
    %v653 = vsub.f32 0.0, %v637
    %v654 = vsub.f32 0.0, %v638
    %v655 = vsub.f32 0.0, %v639
    %v656 = vsub.f32 0.0, %v640
    %v657 = vsub.f32 0.0, %v641
    %v658 = vsub.f32 0.0, %v642
    %v659 = vsub.f32 0.0, %v643
    %v660 = vsub.f32 0.0, %v644
    %v661 = vsub.f32 0.0, %v645
    %v662 = vsub.f32 0.0, %v646
    %v663 = vsub.f32 0.0, %v647
    %v664 = vsub.f32 0.0, %v648
    %v665 = vsub.f32 0.0, %v649
    %v666 = vsub.f32 0.0, %v650
    %v667 = vsub.f32 0.0, %v651
    %v668 = vadd.f32 %v604, %v652
    %v669 = vadd.f32 %v605, %v653
    %v670 = vadd.f32 %v606, %v654
    %v671 = vadd.f32 %v607, %v655
    %v672 = vadd.f32 %v608, %v656
    %v673 = vadd.f32 %v609, %v657
    %v674 = vadd.f32 %v610, %v658
    %v675 = vadd.f32 %v611, %v659
    %v676 = vadd.f32 %v612, %v660
    %v677 = vadd.f32 %v613, %v661
    %v678 = vadd.f32 %v614, %v662
    %v679 = vadd.f32 %v615, %v663
    %v680 = vadd.f32 %v616, %v664
    %v681 = vadd.f32 %v617, %v665
    %v682 = vadd.f32 %v618, %v666
    %v683 = vadd.f32 %v619, %v667
    %v684 = vadd.f32 %v476, %v636
    %v685 = vadd.f32 %v477, %v637
    %v686 = vadd.f32 %v478, %v638
    %v687 = vadd.f32 %v479, %v639
    %v688 = vadd.f32 %v480, %v640
    %v689 = vadd.f32 %v481, %v641
    %v690 = vadd.f32 %v482, %v642
    %v691 = vadd.f32 %v483, %v643
    %v692 = vadd.f32 %v484, %v644
    %v693 = vadd.f32 %v485, %v645
    %v694 = vadd.f32 %v486, %v646
    %v695 = vadd.f32 %v487, %v647
    %v696 = vadd.f32 %v488, %v648
    %v697 = vadd.f32 %v489, %v649
    %v698 = vadd.f32 %v490, %v650
    %v699 = vadd.f32 %v491, %v651
    %716 = vrot.lane.b32.xlu0 %v620, 127
    %v717 = vpop.permute.xlu0 %716
    %718 = vrot.lane.b32.xlu0 %v621, 127
    %v719 = vpop.permute.xlu0 %718
    %720 = vrot.lane.b32.xlu0 %v622, 127
    %v721 = vpop.permute.xlu0 %720
    %722 = vrot.lane.b32.xlu0 %v623, 127
    %v723 = vpop.permute.xlu0 %722
    %724 = vrot.lane.b32.xlu0 %v624, 127
    %v725 = vpop.permute.xlu0 %724
    %726 = vrot.lane.b32.xlu0 %v625, 127
    %v727 = vpop.permute.xlu0 %726
    %728 = vrot.lane.b32.xlu0 %v626, 127
    %v729 = vpop.permute.xlu0 %728
    %730 = vrot.lane.b32.xlu0 %v627, 127
    %v731 = vpop.permute.xlu0 %730
    %732 = vrot.lane.b32.xlu0 %v628, 127
    %v733 = vpop.permute.xlu0 %732
    %734 = vrot.lane.b32.xlu0 %v629, 127
    %v735 = vpop.permute.xlu0 %734
    %736 = vrot.lane.b32.xlu0 %v630, 127
    %v737 = vpop.permute.xlu0 %736
    %738 = vrot.lane.b32.xlu0 %v631, 127
    %v739 = vpop.permute.xlu0 %738
    %740 = vrot.lane.b32.xlu0 %v632, 127
    %v741 = vpop.permute.xlu0 %740
    %742 = vrot.lane.b32.xlu0 %v633, 127
    %v743 = vpop.permute.xlu0 %742
    %744 = vrot.lane.b32.xlu0 %v634, 127
    %v745 = vpop.permute.xlu0 %744
    %746 = vrot.lane.b32.xlu0 %v635, 127
    %v747 = vpop.permute.xlu0 %746
    %v764 = vadd.f32 %v684, %v717
    %v765 = vadd.f32 %v685, %v719
    %v766 = vadd.f32 %v686, %v721
    %v767 = vadd.f32 %v687, %v723
    %v768 = vadd.f32 %v688, %v725
    %v769 = vadd.f32 %v689, %v727
    %v770 = vadd.f32 %v690, %v729
    %v771 = vadd.f32 %v691, %v731
    %v772 = vadd.f32 %v692, %v733
    %v773 = vadd.f32 %v693, %v735
    %v774 = vadd.f32 %v694, %v737
    %v775 = vadd.f32 %v695, %v739
    %v776 = vadd.f32 %v696, %v741
    %v777 = vadd.f32 %v697, %v743
    %v778 = vadd.f32 %v698, %v745
    %v779 = vadd.f32 %v699, %v747
    %796 = vrot.lane.b32.xlu0 %v636, 126
    %v797 = vpop.permute.xlu0 %796
    %798 = vrot.lane.b32.xlu0 %v637, 126
    %v799 = vpop.permute.xlu0 %798
    %800 = vrot.lane.b32.xlu0 %v638, 126
    %v801 = vpop.permute.xlu0 %800
    %802 = vrot.lane.b32.xlu0 %v639, 126
    %v803 = vpop.permute.xlu0 %802
    %804 = vrot.lane.b32.xlu0 %v640, 126
    %v805 = vpop.permute.xlu0 %804
    %806 = vrot.lane.b32.xlu0 %v641, 126
    %v807 = vpop.permute.xlu0 %806
    %808 = vrot.lane.b32.xlu0 %v642, 126
    %v809 = vpop.permute.xlu0 %808
    %810 = vrot.lane.b32.xlu0 %v643, 126
    %v811 = vpop.permute.xlu0 %810
    %812 = vrot.lane.b32.xlu0 %v644, 126
    %v813 = vpop.permute.xlu0 %812
    %814 = vrot.lane.b32.xlu0 %v645, 126
    %v815 = vpop.permute.xlu0 %814
    %816 = vrot.lane.b32.xlu0 %v646, 126
    %v817 = vpop.permute.xlu0 %816
    %818 = vrot.lane.b32.xlu0 %v647, 126
    %v819 = vpop.permute.xlu0 %818
    %820 = vrot.lane.b32.xlu0 %v648, 126
    %v821 = vpop.permute.xlu0 %820
    %822 = vrot.lane.b32.xlu0 %v649, 126
    %v823 = vpop.permute.xlu0 %822
    %824 = vrot.lane.b32.xlu0 %v650, 126
    %v825 = vpop.permute.xlu0 %824
    %826 = vrot.lane.b32.xlu0 %v651, 126
    %v827 = vpop.permute.xlu0 %826
    %v844 = vadd.f32 %v668, %v797
    %v845 = vadd.f32 %v669, %v799
    %v846 = vadd.f32 %v670, %v801
    %v847 = vadd.f32 %v671, %v803
    %v848 = vadd.f32 %v672, %v805
    %v849 = vadd.f32 %v673, %v807
    %v850 = vadd.f32 %v674, %v809
    %v851 = vadd.f32 %v675, %v811
    %v852 = vadd.f32 %v676, %v813
    %v853 = vadd.f32 %v677, %v815
    %v854 = vadd.f32 %v678, %v817
    %v855 = vadd.f32 %v679, %v819
    %v856 = vadd.f32 %v680, %v821
    %v857 = vadd.f32 %v681, %v823
    %v858 = vadd.f32 %v682, %v825
    %v859 = vadd.f32 %v683, %v827
    %v860 = vadd.f32 %v764, %v797
    %v861 = vadd.f32 %v765, %v799
    %v862 = vadd.f32 %v766, %v801
    %v863 = vadd.f32 %v767, %v803
    %v864 = vadd.f32 %v768, %v805
    %v865 = vadd.f32 %v769, %v807
    %v866 = vadd.f32 %v770, %v809
    %v867 = vadd.f32 %v771, %v811
    %v868 = vadd.f32 %v772, %v813
    %v869 = vadd.f32 %v773, %v815
    %v870 = vadd.f32 %v774, %v817
    %v871 = vadd.f32 %v775, %v819
    %v872 = vadd.f32 %v776, %v821
    %v873 = vadd.f32 %v777, %v823
    %v874 = vadd.f32 %v778, %v825
    %v875 = vadd.f32 %v779, %v827
    %v876 = vmul.f32 %v844, %v844
    %v877 = vmul.f32 %v845, %v845
    %v878 = vmul.f32 %v846, %v846
    %v879 = vmul.f32 %v847, %v847
    %v880 = vmul.f32 %v848, %v848
    %v881 = vmul.f32 %v849, %v849
    %v882 = vmul.f32 %v850, %v850
    %v883 = vmul.f32 %v851, %v851
    %v884 = vmul.f32 %v852, %v852
    %v885 = vmul.f32 %v853, %v853
    %v886 = vmul.f32 %v854, %v854
    %v887 = vmul.f32 %v855, %v855
    %v888 = vmul.f32 %v856, %v856
    %v889 = vmul.f32 %v857, %v857
    %v890 = vmul.f32 %v858, %v858
    %v891 = vmul.f32 %v859, %v859
    %v892 = vmul.f32 %v860, %v860
    %v893 = vmul.f32 %v861, %v861
    %v894 = vmul.f32 %v862, %v862
    %v895 = vmul.f32 %v863, %v863
    %v896 = vmul.f32 %v864, %v864
    %v897 = vmul.f32 %v865, %v865
    %v898 = vmul.f32 %v866, %v866
    %v899 = vmul.f32 %v867, %v867
    %v900 = vmul.f32 %v868, %v868
    %v901 = vmul.f32 %v869, %v869
    %v902 = vmul.f32 %v870, %v870
    %v903 = vmul.f32 %v871, %v871
    %v904 = vmul.f32 %v872, %v872
    %v905 = vmul.f32 %v873, %v873
    %v906 = vmul.f32 %v874, %v874
    %v907 = vmul.f32 %v875, %v875
    %v908 = vadd.f32 %v876, %v892
    %v909 = vadd.f32 %v877, %v893
    %v910 = vadd.f32 %v878, %v894
    %v911 = vadd.f32 %v879, %v895
    %v912 = vadd.f32 %v880, %v896
    %v913 = vadd.f32 %v881, %v897
    %v914 = vadd.f32 %v882, %v898
    %v915 = vadd.f32 %v883, %v899
    %v916 = vadd.f32 %v884, %v900
    %v917 = vadd.f32 %v885, %v901
    %v918 = vadd.f32 %v886, %v902
    %v919 = vadd.f32 %v887, %v903
    %v920 = vadd.f32 %v888, %v904
    %v921 = vadd.f32 %v889, %v905
    %v922 = vadd.f32 %v890, %v906
    %v923 = vadd.f32 %v891, %v907
    %v924 = vrsqrt.pop %v908
    %v925 = vmul.f32 %v908, %v924
    %vm926 = vcmp.eq.f32.partialorder %v908, inf
    %v927 = vsel %vm926, %v908, %v925
    %vm928 = vcmp.eq.f32.partialorder %v908, 0.0
    %v929 = vand.u32 %v908, 2147483648
    %v930 = vsel %vm928, %v929, %v927
    %v931 = vrsqrt.pop %v909
    %v932 = vmul.f32 %v909, %v931
    %vm933 = vcmp.eq.f32.partialorder %v909, inf
    %v934 = vsel %vm933, %v909, %v932
    %vm935 = vcmp.eq.f32.partialorder %v909, 0.0
    %v936 = vand.u32 %v909, 2147483648
    %v937 = vsel %vm935, %v936, %v934
    %v938 = vrsqrt.pop %v910
    %v939 = vmul.f32 %v910, %v938
    %vm940 = vcmp.eq.f32.partialorder %v910, inf
    %v941 = vsel %vm940, %v910, %v939
    %vm942 = vcmp.eq.f32.partialorder %v910, 0.0
    %v943 = vand.u32 %v910, 2147483648
    %v944 = vsel %vm942, %v943, %v941
    %v945 = vrsqrt.pop %v911
    %v946 = vmul.f32 %v911, %v945
    %vm947 = vcmp.eq.f32.partialorder %v911, inf
    %v948 = vsel %vm947, %v911, %v946
    %vm949 = vcmp.eq.f32.partialorder %v911, 0.0
    %v950 = vand.u32 %v911, 2147483648
    %v951 = vsel %vm949, %v950, %v948
    %v952 = vrsqrt.pop %v912
    %v953 = vmul.f32 %v912, %v952
    %vm954 = vcmp.eq.f32.partialorder %v912, inf
    %v955 = vsel %vm954, %v912, %v953
    %vm956 = vcmp.eq.f32.partialorder %v912, 0.0
    %v957 = vand.u32 %v912, 2147483648
    %v958 = vsel %vm956, %v957, %v955
    %v959 = vrsqrt.pop %v913
    %v960 = vmul.f32 %v913, %v959
    %vm961 = vcmp.eq.f32.partialorder %v913, inf
    %v962 = vsel %vm961, %v913, %v960
    %vm963 = vcmp.eq.f32.partialorder %v913, 0.0
    %v964 = vand.u32 %v913, 2147483648
    %v965 = vsel %vm963, %v964, %v962
    %v966 = vrsqrt.pop %v914
    %v967 = vmul.f32 %v914, %v966
    %vm968 = vcmp.eq.f32.partialorder %v914, inf
    %v969 = vsel %vm968, %v914, %v967
    %vm970 = vcmp.eq.f32.partialorder %v914, 0.0
    %v971 = vand.u32 %v914, 2147483648
    %v972 = vsel %vm970, %v971, %v969
    %v973 = vrsqrt.pop %v915
    %v974 = vmul.f32 %v915, %v973
    %vm975 = vcmp.eq.f32.partialorder %v915, inf
    %v976 = vsel %vm975, %v915, %v974
    %vm977 = vcmp.eq.f32.partialorder %v915, 0.0
    %v978 = vand.u32 %v915, 2147483648
    %v979 = vsel %vm977, %v978, %v976
    %v980 = vrsqrt.pop %v916
    %v981 = vmul.f32 %v916, %v980
    %vm982 = vcmp.eq.f32.partialorder %v916, inf
    %v983 = vsel %vm982, %v916, %v981
    %vm984 = vcmp.eq.f32.partialorder %v916, 0.0
    %v985 = vand.u32 %v916, 2147483648
    %v986 = vsel %vm984, %v985, %v983
    %v987 = vrsqrt.pop %v917
    %v988 = vmul.f32 %v917, %v987
    %vm989 = vcmp.eq.f32.partialorder %v917, inf
    %v990 = vsel %vm989, %v917, %v988
    %vm991 = vcmp.eq.f32.partialorder %v917, 0.0
    %v992 = vand.u32 %v917, 2147483648
    %v993 = vsel %vm991, %v992, %v990
    %v994 = vrsqrt.pop %v918
    %v995 = vmul.f32 %v918, %v994
    %vm996 = vcmp.eq.f32.partialorder %v918, inf
    %v997 = vsel %vm996, %v918, %v995
    %vm998 = vcmp.eq.f32.partialorder %v918, 0.0
    %v999 = vand.u32 %v918, 2147483648
    %v1000 = vsel %vm998, %v999, %v997
    %v1001 = vrsqrt.pop %v919
    %v1002 = vmul.f32 %v919, %v1001
    %vm1003 = vcmp.eq.f32.partialorder %v919, inf
    %v1004 = vsel %vm1003, %v919, %v1002
    %vm1005 = vcmp.eq.f32.partialorder %v919, 0.0
    %v1006 = vand.u32 %v919, 2147483648
    %v1007 = vsel %vm1005, %v1006, %v1004
    %v1008 = vrsqrt.pop %v920
    %v1009 = vmul.f32 %v920, %v1008
    %vm1010 = vcmp.eq.f32.partialorder %v920, inf
    %v1011 = vsel %vm1010, %v920, %v1009
    %vm1012 = vcmp.eq.f32.partialorder %v920, 0.0
    %v1013 = vand.u32 %v920, 2147483648
    %v1014 = vsel %vm1012, %v1013, %v1011
    %v1015 = vrsqrt.pop %v921
    %v1016 = vmul.f32 %v921, %v1015
    %vm1017 = vcmp.eq.f32.partialorder %v921, inf
    %v1018 = vsel %vm1017, %v921, %v1016
    %vm1019 = vcmp.eq.f32.partialorder %v921, 0.0
    %v1020 = vand.u32 %v921, 2147483648
    %v1021 = vsel %vm1019, %v1020, %v1018
    %v1022 = vrsqrt.pop %v922
    %v1023 = vmul.f32 %v922, %v1022
    %vm1024 = vcmp.eq.f32.partialorder %v922, inf
    %v1025 = vsel %vm1024, %v922, %v1023
    %vm1026 = vcmp.eq.f32.partialorder %v922, 0.0
    %v1027 = vand.u32 %v922, 2147483648
    %v1028 = vsel %vm1026, %v1027, %v1025
    %v1029 = vrsqrt.pop %v923
    %v1030 = vmul.f32 %v923, %v1029
    %vm1031 = vcmp.eq.f32.partialorder %v923, inf
    %v1032 = vsel %vm1031, %v923, %v1030
    %vm1033 = vcmp.eq.f32.partialorder %v923, 0.0
    %v1034 = vand.u32 %v923, 2147483648
    %v1035 = vsel %vm1033, %v1034, %v1032
    %vm1036 = vcmask 130048
    %v1037 = vsel %vm1036, %v930, 0.0
    %1038 = vadd.xlane.f32.xlu0 %v1037
    %v1039 = vpop.xlane.xlu0 %1038
    %v1040 = vsel %vm1036, %v937, 0.0
    %1041 = vadd.xlane.f32.xlu0 %v1040
    %v1042 = vpop.xlane.xlu0 %1041
    %v1043 = vsel %vm1036, %v944, 0.0
    %1044 = vadd.xlane.f32.xlu0 %v1043
    %v1045 = vpop.xlane.xlu0 %1044
    %v1046 = vsel %vm1036, %v951, 0.0
    %1047 = vadd.xlane.f32.xlu0 %v1046
    %v1048 = vpop.xlane.xlu0 %1047
    %v1049 = vsel %vm1036, %v958, 0.0
    %1050 = vadd.xlane.f32.xlu0 %v1049
    %v1051 = vpop.xlane.xlu0 %1050
    %v1052 = vsel %vm1036, %v965, 0.0
    %1053 = vadd.xlane.f32.xlu0 %v1052
    %v1054 = vpop.xlane.xlu0 %1053
    %v1055 = vsel %vm1036, %v972, 0.0
    %1056 = vadd.xlane.f32.xlu0 %v1055
    %v1057 = vpop.xlane.xlu0 %1056
    %v1058 = vsel %vm1036, %v979, 0.0
    %1059 = vadd.xlane.f32.xlu0 %v1058
    %v1060 = vpop.xlane.xlu0 %1059
    %v1061 = vsel %vm1036, %v986, 0.0
    %1062 = vadd.xlane.f32.xlu0 %v1061
    %v1063 = vpop.xlane.xlu0 %1062
    %v1064 = vsel %vm1036, %v993, 0.0
    %1065 = vadd.xlane.f32.xlu0 %v1064
    %v1066 = vpop.xlane.xlu0 %1065
    %v1067 = vsel %vm1036, %v1000, 0.0
    %1068 = vadd.xlane.f32.xlu0 %v1067
    %v1069 = vpop.xlane.xlu0 %1068
    %v1070 = vsel %vm1036, %v1007, 0.0
    %1071 = vadd.xlane.f32.xlu0 %v1070
    %v1072 = vpop.xlane.xlu0 %1071
    %v1073 = vsel %vm1036, %v1014, 0.0
    %1074 = vadd.xlane.f32.xlu0 %v1073
    %v1075 = vpop.xlane.xlu0 %1074
    %v1076 = vsel %vm1036, %v1021, 0.0
    %1077 = vadd.xlane.f32.xlu0 %v1076
    %v1078 = vpop.xlane.xlu0 %1077
    %v1079 = vsel %vm1036, %v1028, 0.0
    %1080 = vadd.xlane.f32.xlu0 %v1079
    %v1081 = vpop.xlane.xlu0 %1080
    %v1082 = vsel %vm1036, %v1035, 0.0
    %1083 = vadd.xlane.f32.xlu0 %v1082
    %v1084 = vpop.xlane.xlu0 %1083
    %v1101 = vlaneseq
    %v1102 = vand.u32 %v1101, 127
    %v1103 = vlaneseq
    %v1104 = vshrl.u32 %v1103, 7
    %v1105 = vsub.s32 %v1102, %v1104
    %v1106 = vrot.slane %v1039, %v1105
    %v1107 = vadd.s32 %v1102, 4294967288
    %v1108 = vlaneseq
    %v1109 = vshrl.u32 %v1108, 7
    %v1110 = vsub.s32 %v1107, %v1109
    %v1111 = vrot.slane %v1042, %v1110
    %vm1112 = vcmask 130112
    %v1113 = vsel %vm1112, %v1111, %v1106
    %v1114 = vlaneseq
    %v1115 = vshrl.u32 %v1114, 7
    %v1116 = vsub.s32 %v1102, %v1115
    %v1117 = vrot.slane %v1045, %v1116
    %v1118 = vlaneseq
    %v1119 = vshrl.u32 %v1118, 7
    %v1120 = vsub.s32 %v1107, %v1119
    %v1121 = vrot.slane %v1048, %v1120
    %v1122 = vsel %vm1112, %v1121, %v1117
    %v1123 = vlaneseq
    %v1124 = vshrl.u32 %v1123, 7
    %v1125 = vsub.s32 %v1102, %v1124
    %v1126 = vrot.slane %v1051, %v1125
    %v1127 = vlaneseq
    %v1128 = vshrl.u32 %v1127, 7
    %v1129 = vsub.s32 %v1107, %v1128
    %v1130 = vrot.slane %v1054, %v1129
    %v1131 = vsel %vm1112, %v1130, %v1126
    %v1132 = vlaneseq
    %v1133 = vshrl.u32 %v1132, 7
    %v1134 = vsub.s32 %v1102, %v1133
    %v1135 = vrot.slane %v1057, %v1134
    %v1136 = vlaneseq
    %v1137 = vshrl.u32 %v1136, 7
    %v1138 = vsub.s32 %v1107, %v1137
    %v1139 = vrot.slane %v1060, %v1138
    %v1140 = vsel %vm1112, %v1139, %v1135
    %v1141 = vlaneseq
    %v1142 = vshrl.u32 %v1141, 7
    %v1143 = vsub.s32 %v1102, %v1142
    %v1144 = vrot.slane %v1063, %v1143
    %v1145 = vlaneseq
    %v1146 = vshrl.u32 %v1145, 7
    %v1147 = vsub.s32 %v1107, %v1146
    %v1148 = vrot.slane %v1066, %v1147
    %v1149 = vsel %vm1112, %v1148, %v1144
    %v1150 = vlaneseq
    %v1151 = vshrl.u32 %v1150, 7
    %v1152 = vsub.s32 %v1102, %v1151
    %v1153 = vrot.slane %v1069, %v1152
    %v1154 = vlaneseq
    %v1155 = vshrl.u32 %v1154, 7
    %v1156 = vsub.s32 %v1107, %v1155
    %v1157 = vrot.slane %v1072, %v1156
    %v1158 = vsel %vm1112, %v1157, %v1153
    %v1159 = vlaneseq
    %v1160 = vshrl.u32 %v1159, 7
    %v1161 = vsub.s32 %v1102, %v1160
    %v1162 = vrot.slane %v1075, %v1161
    %v1163 = vlaneseq
    %v1164 = vshrl.u32 %v1163, 7
    %v1165 = vsub.s32 %v1107, %v1164
    %v1166 = vrot.slane %v1078, %v1165
    %v1167 = vsel %vm1112, %v1166, %v1162
    %v1168 = vlaneseq
    %v1169 = vshrl.u32 %v1168, 7
    %v1170 = vsub.s32 %v1102, %v1169
    %v1171 = vrot.slane %v1081, %v1170
    %v1172 = vlaneseq
    %v1173 = vshrl.u32 %v1172, 7
    %v1174 = vsub.s32 %v1107, %v1173
    %v1175 = vrot.slane %v1084, %v1174
    %v1176 = vsel %vm1112, %v1175, %v1171
    %vm1177 = vcmask 1041409
    %v1178 = vsel %vm1177, %v1122, %v1113
    %vm1179 = vcmask 1042434
    %v1180 = vsel %vm1179, %v1131, %v1178
    %vm1181 = vcmask 1043459
    %v1182 = vsel %vm1181, %v1140, %v1180
    %v1183 = vsel %vm1177, %v1158, %v1149
    %v1184 = vsel %vm1179, %v1167, %v1183
    %v1185 = vsel %vm1181, %v1176, %v1184
    %vm1188 = vcmask 125952
    %v1189 = vsel %vm1188, %v1182, 0.0
    %1190 = vadd.xlane.f32.xlu0 %v1189
    %v1191 = vpop.xlane.xlu0 %1190
    %v1192 = vsel %vm1188, %v1185, 0.0
    %1193 = vadd.xlane.f32.xlu0 %v1192
    %v1194 = vpop.xlane.xlu0 %1193
    %v1195 = vsel %vm1036, %v908, 0.0
    %1196 = vadd.xlane.f32.xlu0 %v1195
    %v1197 = vpop.xlane.xlu0 %1196
    %v1198 = vsel %vm1036, %v909, 0.0
    %1199 = vadd.xlane.f32.xlu0 %v1198
    %v1200 = vpop.xlane.xlu0 %1199
    %v1201 = vsel %vm1036, %v910, 0.0
    %1202 = vadd.xlane.f32.xlu0 %v1201
    %v1203 = vpop.xlane.xlu0 %1202
    %v1204 = vsel %vm1036, %v911, 0.0
    %1205 = vadd.xlane.f32.xlu0 %v1204
    %v1206 = vpop.xlane.xlu0 %1205
    %v1207 = vsel %vm1036, %v912, 0.0
    %1208 = vadd.xlane.f32.xlu0 %v1207
    %v1209 = vpop.xlane.xlu0 %1208
    %v1210 = vsel %vm1036, %v913, 0.0
    %1211 = vadd.xlane.f32.xlu0 %v1210
    %v1212 = vpop.xlane.xlu0 %1211
    %v1213 = vsel %vm1036, %v914, 0.0
    %1214 = vadd.xlane.f32.xlu0 %v1213
    %v1215 = vpop.xlane.xlu0 %1214
    %v1216 = vsel %vm1036, %v915, 0.0
    %1217 = vadd.xlane.f32.xlu0 %v1216
    %v1218 = vpop.xlane.xlu0 %1217
    %v1219 = vsel %vm1036, %v916, 0.0
    %1220 = vadd.xlane.f32.xlu0 %v1219
    %v1221 = vpop.xlane.xlu0 %1220
    %v1222 = vsel %vm1036, %v917, 0.0
    %1223 = vadd.xlane.f32.xlu0 %v1222
    %v1224 = vpop.xlane.xlu0 %1223
    %v1225 = vsel %vm1036, %v918, 0.0
    %1226 = vadd.xlane.f32.xlu0 %v1225
    %v1227 = vpop.xlane.xlu0 %1226
    %v1228 = vsel %vm1036, %v919, 0.0
    %1229 = vadd.xlane.f32.xlu0 %v1228
    %v1230 = vpop.xlane.xlu0 %1229
    %v1231 = vsel %vm1036, %v920, 0.0
    %1232 = vadd.xlane.f32.xlu0 %v1231
    %v1233 = vpop.xlane.xlu0 %1232
    %v1234 = vsel %vm1036, %v921, 0.0
    %1235 = vadd.xlane.f32.xlu0 %v1234
    %v1236 = vpop.xlane.xlu0 %1235
    %v1237 = vsel %vm1036, %v922, 0.0
    %1238 = vadd.xlane.f32.xlu0 %v1237
    %v1239 = vpop.xlane.xlu0 %1238
    %v1240 = vsel %vm1036, %v923, 0.0
    %1241 = vadd.xlane.f32.xlu0 %v1240
    %v1242 = vpop.xlane.xlu0 %1241
    %v1259 = vlaneseq
    %v1260 = vshrl.u32 %v1259, 7
    %v1261 = vsub.s32 %v1102, %v1260
    %v1262 = vrot.slane %v1197, %v1261
    %v1263 = vlaneseq
    %v1264 = vshrl.u32 %v1263, 7
    %v1265 = vsub.s32 %v1107, %v1264
    %v1266 = vrot.slane %v1200, %v1265
    %v1267 = vsel %vm1112, %v1266, %v1262
    %v1268 = vlaneseq
    %v1269 = vshrl.u32 %v1268, 7
    %v1270 = vsub.s32 %v1102, %v1269
    %v1271 = vrot.slane %v1203, %v1270
    %v1272 = vlaneseq
    %v1273 = vshrl.u32 %v1272, 7
    %v1274 = vsub.s32 %v1107, %v1273
    %v1275 = vrot.slane %v1206, %v1274
    %v1276 = vsel %vm1112, %v1275, %v1271
    %v1277 = vlaneseq
    %v1278 = vshrl.u32 %v1277, 7
    %v1279 = vsub.s32 %v1102, %v1278
    %v1280 = vrot.slane %v1209, %v1279
    %v1281 = vlaneseq
    %v1282 = vshrl.u32 %v1281, 7
    %v1283 = vsub.s32 %v1107, %v1282
    %v1284 = vrot.slane %v1212, %v1283
    %v1285 = vsel %vm1112, %v1284, %v1280
    %v1286 = vlaneseq
    %v1287 = vshrl.u32 %v1286, 7
    %v1288 = vsub.s32 %v1102, %v1287
    %v1289 = vrot.slane %v1215, %v1288
    %v1290 = vlaneseq
    %v1291 = vshrl.u32 %v1290, 7
    %v1292 = vsub.s32 %v1107, %v1291
    %v1293 = vrot.slane %v1218, %v1292
    %v1294 = vsel %vm1112, %v1293, %v1289
    %v1295 = vlaneseq
    %v1296 = vshrl.u32 %v1295, 7
    %v1297 = vsub.s32 %v1102, %v1296
    %v1298 = vrot.slane %v1221, %v1297
    %v1299 = vlaneseq
    %v1300 = vshrl.u32 %v1299, 7
    %v1301 = vsub.s32 %v1107, %v1300
    %v1302 = vrot.slane %v1224, %v1301
    %v1303 = vsel %vm1112, %v1302, %v1298
    %v1304 = vlaneseq
    %v1305 = vshrl.u32 %v1304, 7
    %v1306 = vsub.s32 %v1102, %v1305
    %v1307 = vrot.slane %v1227, %v1306
    %v1308 = vlaneseq
    %v1309 = vshrl.u32 %v1308, 7
    %v1310 = vsub.s32 %v1107, %v1309
    %v1311 = vrot.slane %v1230, %v1310
    %v1312 = vsel %vm1112, %v1311, %v1307
    %v1313 = vlaneseq
    %v1314 = vshrl.u32 %v1313, 7
    %v1315 = vsub.s32 %v1102, %v1314
    %v1316 = vrot.slane %v1233, %v1315
    %v1317 = vlaneseq
    %v1318 = vshrl.u32 %v1317, 7
    %v1319 = vsub.s32 %v1107, %v1318
    %v1320 = vrot.slane %v1236, %v1319
    %v1321 = vsel %vm1112, %v1320, %v1316
    %v1322 = vlaneseq
    %v1323 = vshrl.u32 %v1322, 7
    %v1324 = vsub.s32 %v1102, %v1323
    %v1325 = vrot.slane %v1239, %v1324
    %v1326 = vlaneseq
    %v1327 = vshrl.u32 %v1326, 7
    %v1328 = vsub.s32 %v1107, %v1327
    %v1329 = vrot.slane %v1242, %v1328
    %v1330 = vsel %vm1112, %v1329, %v1325
    %v1331 = vsel %vm1177, %v1276, %v1267
    %v1332 = vsel %vm1179, %v1285, %v1331
    %v1333 = vsel %vm1181, %v1294, %v1332
    %v1334 = vsel %vm1177, %v1312, %v1303
    %v1335 = vsel %vm1179, %v1321, %v1334
    %v1336 = vsel %vm1181, %v1330, %v1335
    %v1339 = vsel %vm1188, %v1333, 0.0
    %1340 = vadd.xlane.f32.xlu0 %v1339
    %v1341 = vpop.xlane.xlu0 %1340
    %v1342 = vsel %vm1188, %v1336, 0.0
    %1343 = vadd.xlane.f32.xlu0 %v1342
    %v1344 = vpop.xlane.xlu0 %1343
    %v1345 = vmul.f32 %v1191, 0.00390625
    %v1346 = vmul.f32 %v1194, 0.00390625
    %v1347 = vmul.f32 %v1341, 0.00390625
    %v1348 = vmul.f32 %v1344, 0.00390625
    %v1349 = vmul.f32 %v1345, %v1345
    %v1350 = vmul.f32 %v1346, %v1346
    %v1351 = vsub.f32 %v1347, %v1349
    %v1352 = vsub.f32 %v1348, %v1350
    %v1353 = vmax.f32 %v1351, 0.0
    %v1354 = vmax.f32 %v1352, 0.0
    %v1355 = vrsqrt.pop %v1353
    %v1356 = vmul.f32 %v1353, %v1355
    %vm1357 = vcmp.eq.f32.partialorder %v1353, inf
    %v1358 = vsel %vm1357, %v1353, %v1356
    %vm1359 = vcmp.eq.f32.partialorder %v1353, 0.0
    %v1360 = vand.u32 %v1353, 2147483648
    %v1361 = vsel %vm1359, %v1360, %v1358
    %v1362 = vrsqrt.pop %v1354
    %v1363 = vmul.f32 %v1354, %v1362
    %vm1364 = vcmp.eq.f32.partialorder %v1354, inf
    %v1365 = vsel %vm1364, %v1354, %v1363
    %vm1366 = vcmp.eq.f32.partialorder %v1354, 0.0
    %v1367 = vand.u32 %v1354, 2147483648
    %v1368 = vsel %vm1366, %v1367, %v1365
    %vm1369 = vcmask 3072
    %1370 = vst.msk [vmem:[%s1] sm:$0xf] %vm1369, %v1361
    %1371 = vst.msk [vmem:[%s1 + $0x4] sm:$0xf] %vm1369, %v1368
    // Predicated region
    $region10: #{tpu_custom_call.1} parent=1 // pred_check
      _
    $region11: #{tpu_custom_call.1} parent=1 // pred_check_branch
      %1373 = sbr.rel (0) target = $region13
    $region12: #{tpu_custom_call.1} parent=1 // pred_region
      _
    $region13: #{tpu_custom_call.1} parent=1 // pred_fallthru
      _
    // Predicated region
    $region14: #{tpu_custom_call.1} parent=1 // pred_check
      _
    $region15: #{tpu_custom_call.1} parent=1 // pred_check_branch
      %1375 = sbr.rel (0) target = $region17
    $region16: #{tpu_custom_call.1} parent=1 // pred_region
      _
    $region17: #{tpu_custom_call.1} parent=1 // pred_fallthru
      _
    %1376 = vsyncpa [#allocation4], 1

</llo_original>
